<compile_context>
chip_gen: v6e
topology: v6e:2x2x1
jax: 0.10.0
libtpu: 0.0.40
codegen_flags: <defaults>
</compile_context>

<pallas_src>
import functools

import jax
import jax.numpy as jnp
from jax.experimental import pallas as pl
from jax.experimental.pallas import tpu as pltpu


def _ctrnn_recurrence_kernel(alpha, t_chunk, unroll,
                             drive_ref, whh_ref, rnn_ref, h_scratch):
    """One grid step == t_chunk time steps of the leaky-RNN recurrence for
    one batch block."""
    t_idx = pl.program_id(1)   # time-chunk index (sequential "arbitrary" axis)

    # h_0 = 0 at the start of every batch block's time sweep; scratch carries
    # h across time chunks of the same batch block.
    @pl.when(t_idx == 0)
    def _():
        h_scratch[...] = jnp.zeros_like(h_scratch)

    def step(t, h):
        # drive already contains x_t @ W_in^T + (b_in + b_hh).
        pre = drive_ref[t] + jnp.dot(h.astype(whh_ref.dtype), whh_ref[...],
                                     preferred_element_type=jnp.float32)
        h_new = jnp.maximum(pre, 0.0)            # relu
        h = h + alpha * (h_new - h)              # leaky integration (FMA form)
        rnn_ref[t] = h                           # rnn_output[t]
        return h

    h = jax.lax.fori_loop(0, t_chunk, step, h_scratch[...], unroll=unroll)
    h_scratch[...] = h


def _vmem_capacity_bytes():
    """Per-core VMEM capacity; conservative 64 MiB fallback (v7x)."""
    try:
        cap = getattr(pltpu.get_tpu_info(), "vmem_capacity_bytes", None)
        if cap:
            return int(cap)
    except Exception:
        pass
    return 64 << 20


def ctrnn_plus_output(x, params, *, alpha, t_chunk_max=1024):
    """x: (T, B, I) float32.  Returns (out (T, B, O), rnn_output (T, B, H))."""
    T, B, I = x.shape
    win_t = params["win_t"]     # (I, H)
    bin_ = params["bin"]        # (1, H)
    whh_t = params["whh_t"]     # (H, H)
    bhh = params["bhh"]         # (1, H)
    wfc_t = params["wfc_t"]     # (H, O)
    bfc = params["bfc"]         # (1, O)
    H = whh_t.shape[0]
    O = wfc_t.shape[1]

    # ---- hoisted, fully parallel input projection (off the serial path) ----
    # bf16 operands + f32 accumulation -> MXU bf16 path.
    fused_bias = (bin_ + bhh).astype(jnp.float32)
    drive = (jnp.dot(x.reshape(T * B, I).astype(jnp.bfloat16),
                     win_t.astype(jnp.bfloat16),
                     preferred_element_type=jnp.float32)
             + fused_bias).reshape(T, B, H)

    # ---- padding: batch to sublane multiple (8); split across 2 TCs if big --
    B_pad = max(8, -(-B // 8) * 8)
    n_b_blocks = 2 if (B_pad >= 16 and B_pad % 16 == 0) else 1
    B_block = B_pad // n_b_blocks

    # ---- size t_chunk from an explicit per-generation VMEM budget ----------
    vmem_cap = _vmem_capacity_bytes()
    budget = int(vmem_cap * 0.6)                       # headroom for compiler
    fixed = 2 * H * H * 2 + B_block * H * 4            # W_hh (x2 bufs, bf16) + h
    per_tc = 16 * B_block * H                          # drive + rnn_out, f32, x2 bufs
    tc_max = max(1, (budget - fixed) // per_tc)
    tc = int(max(1, min(T, tc_max, t_chunk_max)))
    T_pad = -(-T // tc) * tc

    drive = jnp.pad(drive, ((0, T_pad - T), (0, B_pad - B), (0, 0)))

    # bf16 recurrent weights for the MXU; accumulation stays f32.
    whh_bf16 = whh_t.astype(jnp.bfloat16)

    # Bounded unroll (review: full unroll spills vregs at larger batch).
    unroll = int(min(tc, 8))
    kernel = functools.partial(_ctrnn_recurrence_kernel, float(alpha), tc, unroll)

    need_bytes = fixed + per_tc * tc
    vmem_limit = int(min(max(vmem_cap - (8 << 20), 16 << 20),
                         max(need_bytes + (4 << 20), 16 << 20)))

    grid_spec = pltpu.PrefetchScalarGridSpec(
        num_scalar_prefetch=0,
        grid=(n_b_blocks, T_pad // tc),
        in_specs=[
            # drive chunk for this (batch block, time chunk)
            pl.BlockSpec((tc, B_block, H), lambda b, c: (c, b, 0)),
            # W_hh^T (bf16), invariant across the whole grid
            pl.BlockSpec((H, H), lambda b, c: (0, 0)),
        ],
        out_specs=pl.BlockSpec((tc, B_block, H), lambda b, c: (c, b, 0)),
        scratch_shapes=[pltpu.VMEM((B_block, H), jnp.float32)],   # carried h
    )

    rnn_out = pl.pallas_call(
        kernel,
        grid_spec=grid_spec,
        out_shape=jax.ShapeDtypeStruct((T_pad, B_pad, H), jnp.float32),
        compiler_params=pltpu.CompilerParams(
            # batch blocks independent -> parallel (2 TCs on v7x);
            # recurrence over time is sequential -> arbitrary.
            dimension_semantics=("parallel", "arbitrary"),
            vmem_limit_bytes=vmem_limit,
        ),
    )(drive, whh_bf16)

    rnn_out = rnn_out[:T, :B, :]

    # ---- hoisted, fully parallel output head (off the serial path) ---------
    out = jax.nn.relu(
        jnp.dot(rnn_out.reshape(T * B, H).astype(jnp.bfloat16),
                wfc_t.astype(jnp.bfloat16),
                preferred_element_type=jnp.float32) + bfc
    ).reshape(T, B, O)
    return out, rnn_out


def _reference(x, params, *, alpha):
    """Pure-JAX f32 reference of the same forward pass (sanity check)."""
    win_t, bin_ = params["win_t"], params["bin"]
    whh_t, bhh = params["whh_t"], params["bhh"]
    wfc_t, bfc = params["wfc_t"], params["bfc"]
    B = x.shape[1]
    H = whh_t.shape[0]

    def step(h, x_t):
        h_new = jax.nn.relu(x_t @ win_t + bin_ + h @ whh_t + bhh)
        h = h * (1.0 - alpha) + h_new * alpha
        return h, h

    h0 = jnp.zeros((B, H), jnp.float32)
    _, rnn_out = jax.lax.scan(step, h0, x)
    out = jax.nn.relu(rnn_out @ wfc_t + bfc)
    return out, rnn_out


def _init_params(key, input_size, hidden_size, output_size):
    """Deterministic nn.Linear-style init (uniform(-1/sqrt(fan_in), +))."""
    ks = jax.random.split(key, 6)

    def lin(kw, kb, fan_in, fan_out):
        bound = 1.0 / jnp.sqrt(fan_in)
        w = jax.random.uniform(kw, (fan_out, fan_in), jnp.float32, -bound, bound)
        b = jax.random.uniform(kb, (fan_out,), jnp.float32, -bound, bound)
        return w, b

    w_in, b_in = lin(ks[0], ks[1], input_size, hidden_size)
    w_hh, b_hh = lin(ks[2], ks[3], hidden_size, hidden_size)
    w_fc, b_fc = lin(ks[4], ks[5], hidden_size, output_size)
    return {
        "win_t": w_in.T,                       # (I, H)
        "bin": b_in.reshape(1, hidden_size),   # (1, H)
        "whh_t": w_hh.T,                       # (H, H)
        "bhh": b_hh.reshape(1, hidden_size),   # (1, H)
        "wfc_t": w_fc.T,                       # (H, O)
        "bfc": b_fc.reshape(1, output_size),   # (1, O)
    }


if __name__ == "__main__":
    dt = 0.01
    tau = 100.0
    alpha = dt / tau

    input_size = 1
    hidden_size = 128
    output_size = 1
    T, B = 8, 2

    key = jax.random.PRNGKey(0)
    k_x, k_p = jax.random.split(key)
    x = jax.random.normal(k_x, (T, B, input_size), jnp.float32)
    params = _init_params(k_p, input_size, hidden_size, output_size)

    out, rnn_out = ctrnn_plus_output(x, params, alpha=alpha)
    out = jax.block_until_ready(out)
    rnn_out = jax.block_until_ready(rnn_out)

    ref_out, ref_rnn = _reference(x, params, alpha=alpha)
    assert out.shape == (T, B, output_size)
    assert rnn_out.shape == (T, B, hidden_size)
    # Tolerance accounts for bf16 operands (f32 accumulation) in the recurrent
    # dot and the hoisted input/output projections.
    assert jnp.allclose(out, ref_out, atol=2e-4, rtol=2e-3)
    assert jnp.allclose(rnn_out, ref_rnn, atol=2e-4, rtol=2e-3)

    print("KERNEL_OK")
</pallas_src>

<mosaic_0001>
module attributes {stable_mosaic.version = 11 : i64} {
  func.func @_ctrnn_recurrence_kernel(%arg0: i32, %arg1: i32, %arg2: memref<8x8x128xf32, #tpu.memory_space<vmem>>, %arg3: memref<128x128xbf16, #tpu.memory_space<vmem>>, %arg4: memref<8x8x128xf32, #tpu.memory_space<vmem>>, %arg5: memref<8x128xf32, #tpu.memory_space<vmem>>) attributes {dimension_semantics = [#tpu.dimension_semantics<parallel>, #tpu.dimension_semantics<arbitrary>], iteration_bounds = array<i64: 1, 1>, scalar_prefetch = 0 : i64, scratch_operands = 1 : i64, tpu.core_type = #tpu.core_type<tc>, window_params = [{transform_indices = @transform_0, window_bounds = array<i64: 8, 8, 128>}, {pipeline_mode = #tpu.pipeline_mode<synchronous>, transform_indices = @transform_1, window_bounds = array<i64: 128, 128>}, {transform_indices = @transform_2, window_bounds = array<i64: 8, 8, 128>}]} {
    %c0_i32 = arith.constant 0 : i32
    %0 = arith.cmpi eq, %arg1, %c0_i32 : i32
    %1 = arith.extui %0 : i1 to i32
    %c0_i32_0 = arith.constant 0 : i32
    %2 = arith.cmpi ne, %1, %c0_i32_0 : i32
    scf.if %2 {
      %cst_76 = arith.constant 0.000000e+00 : f32
      %141 = vector.broadcast %cst_76 : f32 to vector<8x128xf32>
      %c0_77 = arith.constant 0 : index
      %c0_78 = arith.constant 0 : index
      %142 = vector.load %arg5[%c0_77, %c0_78] : memref<8x128xf32, #tpu.memory_space<vmem>>, vector<8x128xf32>
      tpu.vector_store %arg5[%c0_77, %c0_78], %141 {strides = array<i32>} : memref<8x128xf32, #tpu.memory_space<vmem>>, vector<8x128xf32>,
    } else {
    }
    %c0 = arith.constant 0 : index
    %c0_1 = arith.constant 0 : index
    %3 = vector.load %arg5[%c0, %c0_1] : memref<8x128xf32, #tpu.memory_space<vmem>>, vector<8x128xf32>
    %c0_i32_2 = arith.constant 0 : i32
    %4 = arith.index_cast %c0_i32_2 : i32 to index
    %c0_3 = arith.constant 0 : index
    %c0_4 = arith.constant 0 : index
    %5 = vector.load %arg2[%4, %c0_3, %c0_4] : memref<8x8x128xf32, #tpu.memory_space<vmem>>, vector<1x8x128xf32>
    %6 = vector.shape_cast %5 : vector<1x8x128xf32> to vector<8x128xf32>
    %7 = arith.truncf %3 : vector<8x128xf32> to vector<8x128xbf16>
    %c0_5 = arith.constant 0 : index
    %c0_6 = arith.constant 0 : index
    %8 = vector.load %arg3[%c0_5, %c0_6] : memref<128x128xbf16, #tpu.memory_space<vmem>>, vector<128x128xbf16>
    %cst = arith.constant dense<0.000000e+00> : vector<8x128xf32>
    %9 = tpu.matmul %7, %8, %cst {dimension_numbers = #tpu.dot_dimension_numbers<[1], [0], [0], [1], [0, 0, 1, 1], [], []>} : vector<8x128xbf16>, vector<128x128xbf16>, vector<8x128xf32> -> vector<8x128xf32>
    %10 = arith.addf %6, %9 : vector<8x128xf32>
    %cst_7 = arith.constant 0.000000e+00 : f32
    %11 = vector.broadcast %cst_7 : f32 to vector<8x128xf32>
    %12 = arith.maximumf %10, %11 : vector<8x128xf32>
    %13 = arith.subf %12, %3 : vector<8x128xf32>
    %cst_8 = arith.constant 9.99999974E-5 : f32
    %14 = vector.broadcast %cst_8 : f32 to vector<8x128xf32>
    %15 = arith.mulf %14, %13 : vector<8x128xf32>
    %16 = arith.addf %3, %15 : vector<8x128xf32>
    %17 = arith.index_cast %c0_i32_2 : i32 to index
    %c0_9 = arith.constant 0 : index
    %c0_10 = arith.constant 0 : index
    %18 = vector.load %arg4[%17, %c0_9, %c0_10] : memref<8x8x128xf32, #tpu.memory_space<vmem>>, vector<1x8x128xf32>
    %19 = vector.shape_cast %18 : vector<1x8x128xf32> to vector<8x128xf32>
    %20 = vector.shape_cast %16 : vector<8x128xf32> to vector<1x8x128xf32>
    tpu.vector_store %arg4[%17, %c0_9, %c0_10], %20 {strides = array<i32>} : memref<8x8x128xf32, #tpu.memory_space<vmem>>, vector<1x8x128xf32>,
    %c1_i32 = arith.constant 1 : i32
    %21 = arith.index_cast %c1_i32 : i32 to index
    %c0_11 = arith.constant 0 : index
    %c0_12 = arith.constant 0 : index
    %22 = vector.load %arg2[%21, %c0_11, %c0_12] : memref<8x8x128xf32, #tpu.memory_space<vmem>>, vector<1x8x128xf32>
    %23 = vector.shape_cast %22 : vector<1x8x128xf32> to vector<8x128xf32>
    %24 = arith.truncf %16 : vector<8x128xf32> to vector<8x128xbf16>
    %c0_13 = arith.constant 0 : index
    %c0_14 = arith.constant 0 : index
    %25 = vector.load %arg3[%c0_13, %c0_14] : memref<128x128xbf16, #tpu.memory_space<vmem>>, vector<128x128xbf16>
    %cst_15 = arith.constant dense<0.000000e+00> : vector<8x128xf32>
    %26 = tpu.matmul %24, %25, %cst_15 {dimension_numbers = #tpu.dot_dimension_numbers<[1], [0], [0], [1], [0, 0, 1, 1], [], []>} : vector<8x128xbf16>, vector<128x128xbf16>, vector<8x128xf32> -> vector<8x128xf32>
    %27 = arith.addf %23, %26 : vector<8x128xf32>
    %cst_16 = arith.constant 0.000000e+00 : f32
    %28 = vector.broadcast %cst_16 : f32 to vector<8x128xf32>
    %29 = arith.maximumf %27, %28 : vector<8x128xf32>
    %30 = arith.subf %29, %16 : vector<8x128xf32>
    %cst_17 = arith.constant 9.99999974E-5 : f32
    %31 = vector.broadcast %cst_17 : f32 to vector<8x128xf32>
    %32 = arith.mulf %31, %30 : vector<8x128xf32>
    %33 = arith.addf %16, %32 : vector<8x128xf32>
    %34 = arith.index_cast %c1_i32 : i32 to index
    %c0_18 = arith.constant 0 : index
    %c0_19 = arith.constant 0 : index
    %35 = vector.load %arg4[%34, %c0_18, %c0_19] : memref<8x8x128xf32, #tpu.memory_space<vmem>>, vector<1x8x128xf32>
    %36 = vector.shape_cast %35 : vector<1x8x128xf32> to vector<8x128xf32>
    %37 = vector.shape_cast %33 : vector<8x128xf32> to vector<1x8x128xf32>
    tpu.vector_store %arg4[%34, %c0_18, %c0_19], %37 {strides = array<i32>} : memref<8x8x128xf32, #tpu.memory_space<vmem>>, vector<1x8x128xf32>,
    %c2_i32 = arith.constant 2 : i32
    %38 = arith.index_cast %c2_i32 : i32 to index
    %c0_20 = arith.constant 0 : index
    %c0_21 = arith.constant 0 : index
    %39 = vector.load %arg2[%38, %c0_20, %c0_21] : memref<8x8x128xf32, #tpu.memory_space<vmem>>, vector<1x8x128xf32>
    %40 = vector.shape_cast %39 : vector<1x8x128xf32> to vector<8x128xf32>
    %41 = arith.truncf %33 : vector<8x128xf32> to vector<8x128xbf16>
    %c0_22 = arith.constant 0 : index
    %c0_23 = arith.constant 0 : index
    %42 = vector.load %arg3[%c0_22, %c0_23] : memref<128x128xbf16, #tpu.memory_space<vmem>>, vector<128x128xbf16>
    %cst_24 = arith.constant dense<0.000000e+00> : vector<8x128xf32>
    %43 = tpu.matmul %41, %42, %cst_24 {dimension_numbers = #tpu.dot_dimension_numbers<[1], [0], [0], [1], [0, 0, 1, 1], [], []>} : vector<8x128xbf16>, vector<128x128xbf16>, vector<8x128xf32> -> vector<8x128xf32>
    %44 = arith.addf %40, %43 : vector<8x128xf32>
    %cst_25 = arith.constant 0.000000e+00 : f32
    %45 = vector.broadcast %cst_25 : f32 to vector<8x128xf32>
    %46 = arith.maximumf %44, %45 : vector<8x128xf32>
    %47 = arith.subf %46, %33 : vector<8x128xf32>
    %cst_26 = arith.constant 9.99999974E-5 : f32
    %48 = vector.broadcast %cst_26 : f32 to vector<8x128xf32>
    %49 = arith.mulf %48, %47 : vector<8x128xf32>
    %50 = arith.addf %33, %49 : vector<8x128xf32>
    %51 = arith.index_cast %c2_i32 : i32 to index
    %c0_27 = arith.constant 0 : index
    %c0_28 = arith.constant 0 : index
    %52 = vector.load %arg4[%51, %c0_27, %c0_28] : memref<8x8x128xf32, #tpu.memory_space<vmem>>, vector<1x8x128xf32>
    %53 = vector.shape_cast %52 : vector<1x8x128xf32> to vector<8x128xf32>
    %54 = vector.shape_cast %50 : vector<8x128xf32> to vector<1x8x128xf32>
    tpu.vector_store %arg4[%51, %c0_27, %c0_28], %54 {strides = array<i32>} : memref<8x8x128xf32, #tpu.memory_space<vmem>>, vector<1x8x128xf32>,
    %c3_i32 = arith.constant 3 : i32
    %55 = arith.index_cast %c3_i32 : i32 to index
    %c0_29 = arith.constant 0 : index
    %c0_30 = arith.constant 0 : index
    %56 = vector.load %arg2[%55, %c0_29, %c0_30] : memref<8x8x128xf32, #tpu.memory_space<vmem>>, vector<1x8x128xf32>
    %57 = vector.shape_cast %56 : vector<1x8x128xf32> to vector<8x128xf32>
    %58 = arith.truncf %50 : vector<8x128xf32> to vector<8x128xbf16>
    %c0_31 = arith.constant 0 : index
    %c0_32 = arith.constant 0 : index
    %59 = vector.load %arg3[%c0_31, %c0_32] : memref<128x128xbf16, #tpu.memory_space<vmem>>, vector<128x128xbf16>
    %cst_33 = arith.constant dense<0.000000e+00> : vector<8x128xf32>
    %60 = tpu.matmul %58, %59, %cst_33 {dimension_numbers = #tpu.dot_dimension_numbers<[1], [0], [0], [1], [0, 0, 1, 1], [], []>} : vector<8x128xbf16>, vector<128x128xbf16>, vector<8x128xf32> -> vector<8x128xf32>
    %61 = arith.addf %57, %60 : vector<8x128xf32>
    %cst_34 = arith.constant 0.000000e+00 : f32
    %62 = vector.broadcast %cst_34 : f32 to vector<8x128xf32>
    %63 = arith.maximumf %61, %62 : vector<8x128xf32>
    %64 = arith.subf %63, %50 : vector<8x128xf32>
    %cst_35 = arith.constant 9.99999974E-5 : f32
    %65 = vector.broadcast %cst_35 : f32 to vector<8x128xf32>
    %66 = arith.mulf %65, %64 : vector<8x128xf32>
    %67 = arith.addf %50, %66 : vector<8x128xf32>
    %68 = arith.index_cast %c3_i32 : i32 to index
    %c0_36 = arith.constant 0 : index
    %c0_37 = arith.constant 0 : index
    %69 = vector.load %arg4[%68, %c0_36, %c0_37] : memref<8x8x128xf32, #tpu.memory_space<vmem>>, vector<1x8x128xf32>
    %70 = vector.shape_cast %69 : vector<1x8x128xf32> to vector<8x128xf32>
    %71 = vector.shape_cast %67 : vector<8x128xf32> to vector<1x8x128xf32>
    tpu.vector_store %arg4[%68, %c0_36, %c0_37], %71 {strides = array<i32>} : memref<8x8x128xf32, #tpu.memory_space<vmem>>, vector<1x8x128xf32>,
    %c4_i32 = arith.constant 4 : i32
    %72 = arith.index_cast %c4_i32 : i32 to index
    %c0_38 = arith.constant 0 : index
    %c0_39 = arith.constant 0 : index
    %73 = vector.load %arg2[%72, %c0_38, %c0_39] : memref<8x8x128xf32, #tpu.memory_space<vmem>>, vector<1x8x128xf32>
    %74 = vector.shape_cast %73 : vector<1x8x128xf32> to vector<8x128xf32>
    %75 = arith.truncf %67 : vector<8x128xf32> to vector<8x128xbf16>
    %c0_40 = arith.constant 0 : index
    %c0_41 = arith.constant 0 : index
    %76 = vector.load %arg3[%c0_40, %c0_41] : memref<128x128xbf16, #tpu.memory_space<vmem>>, vector<128x128xbf16>
    %cst_42 = arith.constant dense<0.000000e+00> : vector<8x128xf32>
    %77 = tpu.matmul %75, %76, %cst_42 {dimension_numbers = #tpu.dot_dimension_numbers<[1], [0], [0], [1], [0, 0, 1, 1], [], []>} : vector<8x128xbf16>, vector<128x128xbf16>, vector<8x128xf32> -> vector<8x128xf32>
    %78 = arith.addf %74, %77 : vector<8x128xf32>
    %cst_43 = arith.constant 0.000000e+00 : f32
    %79 = vector.broadcast %cst_43 : f32 to vector<8x128xf32>
    %80 = arith.maximumf %78, %79 : vector<8x128xf32>
    %81 = arith.subf %80, %67 : vector<8x128xf32>
    %cst_44 = arith.constant 9.99999974E-5 : f32
    %82 = vector.broadcast %cst_44 : f32 to vector<8x128xf32>
    %83 = arith.mulf %82, %81 : vector<8x128xf32>
    %84 = arith.addf %67, %83 : vector<8x128xf32>
    %85 = arith.index_cast %c4_i32 : i32 to index
    %c0_45 = arith.constant 0 : index
    %c0_46 = arith.constant 0 : index
    %86 = vector.load %arg4[%85, %c0_45, %c0_46] : memref<8x8x128xf32, #tpu.memory_space<vmem>>, vector<1x8x128xf32>
    %87 = vector.shape_cast %86 : vector<1x8x128xf32> to vector<8x128xf32>
    %88 = vector.shape_cast %84 : vector<8x128xf32> to vector<1x8x128xf32>
    tpu.vector_store %arg4[%85, %c0_45, %c0_46], %88 {strides = array<i32>} : memref<8x8x128xf32, #tpu.memory_space<vmem>>, vector<1x8x128xf32>,
    %c5_i32 = arith.constant 5 : i32
    %89 = arith.index_cast %c5_i32 : i32 to index
    %c0_47 = arith.constant 0 : index
    %c0_48 = arith.constant 0 : index
    %90 = vector.load %arg2[%89, %c0_47, %c0_48] : memref<8x8x128xf32, #tpu.memory_space<vmem>>, vector<1x8x128xf32>
    %91 = vector.shape_cast %90 : vector<1x8x128xf32> to vector<8x128xf32>
    %92 = arith.truncf %84 : vector<8x128xf32> to vector<8x128xbf16>
    %c0_49 = arith.constant 0 : index
    %c0_50 = arith.constant 0 : index
    %93 = vector.load %arg3[%c0_49, %c0_50] : memref<128x128xbf16, #tpu.memory_space<vmem>>, vector<128x128xbf16>
    %cst_51 = arith.constant dense<0.000000e+00> : vector<8x128xf32>
    %94 = tpu.matmul %92, %93, %cst_51 {dimension_numbers = #tpu.dot_dimension_numbers<[1], [0], [0], [1], [0, 0, 1, 1], [], []>} : vector<8x128xbf16>, vector<128x128xbf16>, vector<8x128xf32> -> vector<8x128xf32>
    %95 = arith.addf %91, %94 : vector<8x128xf32>
    %cst_52 = arith.constant 0.000000e+00 : f32
    %96 = vector.broadcast %cst_52 : f32 to vector<8x128xf32>
    %97 = arith.maximumf %95, %96 : vector<8x128xf32>
    %98 = arith.subf %97, %84 : vector<8x128xf32>
    %cst_53 = arith.constant 9.99999974E-5 : f32
    %99 = vector.broadcast %cst_53 : f32 to vector<8x128xf32>
    %100 = arith.mulf %99, %98 : vector<8x128xf32>
    %101 = arith.addf %84, %100 : vector<8x128xf32>
    %102 = arith.index_cast %c5_i32 : i32 to index
    %c0_54 = arith.constant 0 : index
    %c0_55 = arith.constant 0 : index
    %103 = vector.load %arg4[%102, %c0_54, %c0_55] : memref<8x8x128xf32, #tpu.memory_space<vmem>>, vector<1x8x128xf32>
    %104 = vector.shape_cast %103 : vector<1x8x128xf32> to vector<8x128xf32>
    %105 = vector.shape_cast %101 : vector<8x128xf32> to vector<1x8x128xf32>
    tpu.vector_store %arg4[%102, %c0_54, %c0_55], %105 {strides = array<i32>} : memref<8x8x128xf32, #tpu.memory_space<vmem>>, vector<1x8x128xf32>,
    %c6_i32 = arith.constant 6 : i32
    %106 = arith.index_cast %c6_i32 : i32 to index
    %c0_56 = arith.constant 0 : index
    %c0_57 = arith.constant 0 : index
    %107 = vector.load %arg2[%106, %c0_56, %c0_57] : memref<8x8x128xf32, #tpu.memory_space<vmem>>, vector<1x8x128xf32>
    %108 = vector.shape_cast %107 : vector<1x8x128xf32> to vector<8x128xf32>
    %109 = arith.truncf %101 : vector<8x128xf32> to vector<8x128xbf16>
    %c0_58 = arith.constant 0 : index
    %c0_59 = arith.constant 0 : index
    %110 = vector.load %arg3[%c0_58, %c0_59] : memref<128x128xbf16, #tpu.memory_space<vmem>>, vector<128x128xbf16>
    %cst_60 = arith.constant dense<0.000000e+00> : vector<8x128xf32>
    %111 = tpu.matmul %109, %110, %cst_60 {dimension_numbers = #tpu.dot_dimension_numbers<[1], [0], [0], [1], [0, 0, 1, 1], [], []>} : vector<8x128xbf16>, vector<128x128xbf16>, vector<8x128xf32> -> vector<8x128xf32>
    %112 = arith.addf %108, %111 : vector<8x128xf32>
    %cst_61 = arith.constant 0.000000e+00 : f32
    %113 = vector.broadcast %cst_61 : f32 to vector<8x128xf32>
    %114 = arith.maximumf %112, %113 : vector<8x128xf32>
    %115 = arith.subf %114, %101 : vector<8x128xf32>
    %cst_62 = arith.constant 9.99999974E-5 : f32
    %116 = vector.broadcast %cst_62 : f32 to vector<8x128xf32>
    %117 = arith.mulf %116, %115 : vector<8x128xf32>
    %118 = arith.addf %101, %117 : vector<8x128xf32>
    %119 = arith.index_cast %c6_i32 : i32 to index
    %c0_63 = arith.constant 0 : index
    %c0_64 = arith.constant 0 : index
    %120 = vector.load %arg4[%119, %c0_63, %c0_64] : memref<8x8x128xf32, #tpu.memory_space<vmem>>, vector<1x8x128xf32>
    %121 = vector.shape_cast %120 : vector<1x8x128xf32> to vector<8x128xf32>
    %122 = vector.shape_cast %118 : vector<8x128xf32> to vector<1x8x128xf32>
    tpu.vector_store %arg4[%119, %c0_63, %c0_64], %122 {strides = array<i32>} : memref<8x8x128xf32, #tpu.memory_space<vmem>>, vector<1x8x128xf32>,
    %c7_i32 = arith.constant 7 : i32
    %123 = arith.index_cast %c7_i32 : i32 to index
    %c0_65 = arith.constant 0 : index
    %c0_66 = arith.constant 0 : index
    %124 = vector.load %arg2[%123, %c0_65, %c0_66] : memref<8x8x128xf32, #tpu.memory_space<vmem>>, vector<1x8x128xf32>
    %125 = vector.shape_cast %124 : vector<1x8x128xf32> to vector<8x128xf32>
    %126 = arith.truncf %118 : vector<8x128xf32> to vector<8x128xbf16>
    %c0_67 = arith.constant 0 : index
    %c0_68 = arith.constant 0 : index
    %127 = vector.load %arg3[%c0_67, %c0_68] : memref<128x128xbf16, #tpu.memory_space<vmem>>, vector<128x128xbf16>
    %cst_69 = arith.constant dense<0.000000e+00> : vector<8x128xf32>
    %128 = tpu.matmul %126, %127, %cst_69 {dimension_numbers = #tpu.dot_dimension_numbers<[1], [0], [0], [1], [0, 0, 1, 1], [], []>} : vector<8x128xbf16>, vector<128x128xbf16>, vector<8x128xf32> -> vector<8x128xf32>
    %129 = arith.addf %125, %128 : vector<8x128xf32>
    %cst_70 = arith.constant 0.000000e+00 : f32
    %130 = vector.broadcast %cst_70 : f32 to vector<8x128xf32>
    %131 = arith.maximumf %129, %130 : vector<8x128xf32>
    %132 = arith.subf %131, %118 : vector<8x128xf32>
    %cst_71 = arith.constant 9.99999974E-5 : f32
    %133 = vector.broadcast %cst_71 : f32 to vector<8x128xf32>
    %134 = arith.mulf %133, %132 : vector<8x128xf32>
    %135 = arith.addf %118, %134 : vector<8x128xf32>
    %136 = arith.index_cast %c7_i32 : i32 to index
    %c0_72 = arith.constant 0 : index
    %c0_73 = arith.constant 0 : index
    %137 = vector.load %arg4[%136, %c0_72, %c0_73] : memref<8x8x128xf32, #tpu.memory_space<vmem>>, vector<1x8x128xf32>
    %138 = vector.shape_cast %137 : vector<1x8x128xf32> to vector<8x128xf32>
    %139 = vector.shape_cast %135 : vector<8x128xf32> to vector<1x8x128xf32>
    tpu.vector_store %arg4[%136, %c0_72, %c0_73], %139 {strides = array<i32>} : memref<8x8x128xf32, #tpu.memory_space<vmem>>, vector<1x8x128xf32>,
    %c8_i32 = arith.constant 8 : i32
    %c0_74 = arith.constant 0 : index
    %c0_75 = arith.constant 0 : index
    %140 = vector.load %arg5[%c0_74, %c0_75] : memref<8x128xf32, #tpu.memory_space<vmem>>, vector<8x128xf32>
    tpu.vector_store %arg5[%c0_74, %c0_75], %135 {strides = array<i32>} : memref<8x128xf32, #tpu.memory_space<vmem>>, vector<8x128xf32>,
    return
  }
  func.func @transform_0(%arg0: i32, %arg1: i32) -> (i32, i32, i32) {
    %c0_i32 = arith.constant 0 : i32
    %c0_i32_0 = arith.constant 0 : i32
    return %arg1, %arg0, %c0_i32 : i32, i32, i32
  }
  func.func @transform_1(%arg0: i32, %arg1: i32) -> (i32, i32) {
    %c0_i32 = arith.constant 0 : i32
    %c0_i32_0 = arith.constant 0 : i32
    %c0_i32_1 = arith.constant 0 : i32
    return %c0_i32, %c0_i32_0 : i32, i32
  }
  func.func @transform_2(%arg0: i32, %arg1: i32) -> (i32, i32, i32) {
    %c0_i32 = arith.constant 0 : i32
    %c0_i32_0 = arith.constant 0 : i32
    return %arg1, %arg0, %c0_i32 : i32, i32, i32
  }
}

</mosaic_0001>

<llo_original>
// kernel: tpu_custom_call.1
$region0: #{tpu_custom_call.1}
  #allocation0 [shape = 'u32[]', space=smem, size = 0x4, offset = 0x4, fixed_abs, tag = 'smem constant byte address 0x4 - core index']
  #allocation1 [shape = 'u32[144,128]{1,0:T(1,128)}', space=vmem, size = 0x12000, scoped, tag = 'internal scratch']
  #allocation2 [shape = 'f32[8,128]{1,0:T(8,128)}', space=vmem, size = 0x1000, scoped, tag = 'scratch operand']
  %s0 = inlined_call_operand.hbm [shape: f32[8,8,128], index: 0, kind: input, shape index: {}]
  %s1 = inlined_call_operand.hbm [shape: bf16[128,128], index: 1, kind: input, shape index: {}]
  %s2 = inlined_call_operand.hbm [shape: f32[8,8,128], index: 2, kind: output, shape index: {}]
  %s3 = sld [smem:[#allocation0]]
  $region30: #{tpu_custom_call.1} parent=0
    _
  %s5 = ssub.s32 1, %s3
  %s6 = scalar_select 0, %s5, %s3
  $region1: #{tpu_custom_call.1} parent=0
    #allocation3 [shape = 'u8[32768]{0}', space=vmem, size = 0x8000, scoped, tag = 'input window, operand 0, single buffered']
    #allocation4 [shape = 's32[1]{0}', space=sflag, size = 0x4, scoped, tag = 'scoped memory for tpu_custom_call.1']
    #allocation5 [shape = 's32[1]{0}', space=sflag, size = 0x4, scoped, tag = 'scoped memory for tpu_custom_call.1']
    #allocation6 [shape = 'u8[32768]{0}', space=vmem, size = 0x8000, scoped, tag = 'input window, operand 1, single buffered']
    #allocation7 [shape = 's32[1]{0}', space=sflag, size = 0x4, scoped, tag = 'scoped memory for tpu_custom_call.1']
    #allocation8 [shape = 'u8[32768]{0}', space=vmem, size = 0x8000, scoped, tag = 'output window, operand 0, single buffered']
    %7 = vsyncpa [#allocation4], 0
    %8 = vsyncpa [#allocation7], 0
    %9 = vsyncpa [#allocation5], 0
    // Predicated region
    $region2: #{tpu_custom_call.1} parent=1 // pred_check
      _
    $region3: #{tpu_custom_call.1} parent=1 // pred_check_branch
      %11 = sbr.rel (0) target = $region5
    $region4: #{tpu_custom_call.1} parent=1 // pred_region
      %s13 = ssub.s32 1024, 1024
      %14 = vsyncadd [#allocation4], %s13
      %s15 = sshll.u32 [#allocation3], 4
      %s16 = int_to_ptr.vmem [resolvable:$true] %s15
      %21 = dma.hbm_to_vmem [thread:$0]  %s0, 1024, %s16, [#allocation4], 128, 128, 8
    $region5: #{tpu_custom_call.1} parent=1 // pred_fallthru
      _
    // Predicated region
    $region6: #{tpu_custom_call.1} parent=1 // pred_check
      _
    $region7: #{tpu_custom_call.1} parent=1 // pred_check_branch
      %23 = sbr.rel (0) target = $region9
    $region8: #{tpu_custom_call.1} parent=1 // pred_region
      %s25 = ssub.s32 1024, 1024
      %26 = vsyncadd [#allocation7], %s25
      %s27 = sshll.u32 [#allocation6], 4
      %s28 = int_to_ptr.vmem [resolvable:$true] %s27
      %33 = dma.hbm_to_vmem [thread:$0]  %s1, 1024, %s28, [#allocation7], 64, 64, 4
    $region9: #{tpu_custom_call.1} parent=1 // pred_fallthru
      _
    // Predicated region
    $region10: #{tpu_custom_call.1} parent=1 // pred_check
      _
    $region11: #{tpu_custom_call.1} parent=1 // pred_check_branch
      %35 = sbr.rel (0) target = $region13
    $region12: #{tpu_custom_call.1} parent=1 // pred_region
      %36 = dma.done [#allocation4], 1024
    $region13: #{tpu_custom_call.1} parent=1 // pred_fallthru
      _
    // Predicated region
    $region14: #{tpu_custom_call.1} parent=1 // pred_check
      _
    $region15: #{tpu_custom_call.1} parent=1 // pred_check_branch
      %38 = sbr.rel (0) target = $region17
    $region16: #{tpu_custom_call.1} parent=1 // pred_region
      %39 = dma.done [#allocation7], 1024
    $region17: #{tpu_custom_call.1} parent=1 // pred_fallthru
      _
    %p41 = scmp.eq.s32.totalorder 0, 0
    // Predicated region
    $region18: #{tpu_custom_call.1} parent=1 // pred_check
      %p42 = pneg %p41
    $region19: #{tpu_custom_call.1} parent=1 // pred_check_branch
      %44 = sbr.rel (%p42) target = $region21
    $region20: #{tpu_custom_call.1} parent=1 // pred_region
      %45 = vst [vmem:[#allocation2] sm:$0xff] 0.0
    $region21: #{tpu_custom_call.1} parent=1 // pred_fallthru
      _
    %v46 = vld [vmem:[#allocation2] sm:$0xff]
    %v47 = vld [vmem:[#allocation3] sm:$0xff]
    %v48 = vpack.c.bf16 %v46, %v46
    %v49 = vld [vmem:[#allocation6] sm:$0xf]
    %v50 = vld [vmem:[#allocation6 + $0x4] sm:$0xf]
    %v51 = vld [vmem:[#allocation6 + $0x8] sm:$0xf]
    %v52 = vld [vmem:[#allocation6 + $0xc] sm:$0xf]
    %v53 = vld [vmem:[#allocation6 + $0x10] sm:$0xf]
    %v54 = vld [vmem:[#allocation6 + $0x14] sm:$0xf]
    %v55 = vld [vmem:[#allocation6 + $0x18] sm:$0xf]
    %v56 = vld [vmem:[#allocation6 + $0x1c] sm:$0xf]
    %v57 = vld [vmem:[#allocation6 + $0x20] sm:$0xf]
    %v58 = vld [vmem:[#allocation6 + $0x24] sm:$0xf]
    %v59 = vld [vmem:[#allocation6 + $0x28] sm:$0xf]
    %v60 = vld [vmem:[#allocation6 + $0x2c] sm:$0xf]
    %v61 = vld [vmem:[#allocation6 + $0x30] sm:$0xf]
    %v62 = vld [vmem:[#allocation6 + $0x34] sm:$0xf]
    %v63 = vld [vmem:[#allocation6 + $0x38] sm:$0xf]
    %v64 = vld [vmem:[#allocation6 + $0x3c] sm:$0xf]
    %v81 = vunpack.c.l.b16 %v49
    %v82 = vunpack.c.l.b16 %v50
    %v83 = vunpack.c.l.b16 %v51
    %v84 = vunpack.c.l.b16 %v52
    %v85 = vunpack.c.l.b16 %v53
    %v86 = vunpack.c.l.b16 %v54
    %v87 = vunpack.c.l.b16 %v55
    %v88 = vunpack.c.l.b16 %v56
    %v89 = vunpack.c.l.b16 %v57
    %v90 = vunpack.c.l.b16 %v58
    %v91 = vunpack.c.l.b16 %v59
    %v92 = vunpack.c.l.b16 %v60
    %v93 = vunpack.c.l.b16 %v61
    %v94 = vunpack.c.l.b16 %v62
    %v95 = vunpack.c.l.b16 %v63
    %v96 = vunpack.c.l.b16 %v64
    %v97 = vpack.c.b16 %v82, %v81
    %v98 = vpack.c.b16 %v84, %v83
    %v99 = vpack.c.b16 %v86, %v85
    %v100 = vpack.c.b16 %v88, %v87
    %v101 = vpack.c.b16 %v90, %v89
    %v102 = vpack.c.b16 %v92, %v91
    %v103 = vpack.c.b16 %v94, %v93
    %v104 = vpack.c.b16 %v96, %v95
    %113 = vmatprep.subr.bf16.mxu0 0
    %114 = vmatpush1.bf16.msra.mxu0 %v104
    %115 = vmatprep.subr.bf16.mxu0 0
    %116 = vmatpush1.bf16.msra.mxu0 %v103
    %117 = vmatprep.subr.bf16.mxu0 0
    %118 = vmatpush1.bf16.msra.mxu0 %v102
    %119 = vmatprep.subr.bf16.mxu0 0
    %120 = vmatpush1.bf16.msra.mxu0 %v101
    %121 = vmatprep.subr.bf16.mxu0 0
    %122 = vmatpush1.bf16.msra.mxu0 %v100
    %123 = vmatprep.subr.bf16.mxu0 0
    %124 = vmatpush1.bf16.msra.mxu0 %v99
    %125 = vmatprep.subr.bf16.mxu0 0
    %126 = vmatpush1.bf16.msra.mxu0 %v98
    %127 = vmatprep.subr.bf16.mxu0 0
    %128 = vmatpush1.bf16.msra.mxu0 %v97
    %129 = vmatprep.subr.bf16.mxu0 0
    %130 = vmatpush2.bf16.msra.mxu0 0
    %131 = vmatprep.subr.bf16.mxu0 0
    %132 = vmatpush2.bf16.msra.mxu0 0
    %133 = vmatprep.subr.bf16.mxu0 0
    %134 = vmatpush2.bf16.msra.mxu0 0
    %135 = vmatprep.subr.bf16.mxu0 0
    %136 = vmatpush2.bf16.msra.mxu0 0
    %137 = vmatprep.subr.bf16.mxu0 0
    %138 = vmatpush2.bf16.msra.mxu0 0
    %139 = vmatprep.subr.bf16.mxu0 0
    %140 = vmatpush2.bf16.msra.mxu0 0
    %141 = vmatprep.subr.bf16.mxu0 0
    %142 = vmatpush2.bf16.msra.mxu0 0
    %143 = vmatprep.subr.bf16.mxu0 0
    %144 = vmatpush2.bf16.msra.mxu0 0
    %145 = vmatprep.mubr.bf16.mxu0 0
    %146 = vmatmul.mubr.bf16.gmra.mxu0 %v48
    %v147 = vpop.f32.mrf.mxu0
    %v148 = vadd.f32 0.0, %v147
    %v149 = vpop.f32.mrf.mxu0
    %v150 = vpop.f32.mrf.mxu0
    %v151 = vpop.f32.mrf.mxu0
    %152 = vdwg.mxu0
    %v153 = vadd.f32 %v47, %v148
    %v154 = vmax.f32 %v153, 0.0
    %v155 = vsub.f32 %v154, %v46
    %v156 = vmul.f32 %v155, 0.0001
    %v157 = vadd.f32 %v46, %v156
    %158 = vst [vmem:[#allocation8] sm:$0xff] %v157
    %s159 = scalar_lea.vmem [#allocation3], 8
    %v160 = vld [vmem:[%s159] sm:$0xff]
    %v161 = vpack.c.bf16 %v157, %v157
    %v162 = vld [vmem:[#allocation6] sm:$0xf]
    %v163 = vld [vmem:[#allocation6 + $0x4] sm:$0xf]
    %v164 = vld [vmem:[#allocation6 + $0x8] sm:$0xf]
    %v165 = vld [vmem:[#allocation6 + $0xc] sm:$0xf]
    %v166 = vld [vmem:[#allocation6 + $0x10] sm:$0xf]
    %v167 = vld [vmem:[#allocation6 + $0x14] sm:$0xf]
    %v168 = vld [vmem:[#allocation6 + $0x18] sm:$0xf]
    %v169 = vld [vmem:[#allocation6 + $0x1c] sm:$0xf]
    %v170 = vld [vmem:[#allocation6 + $0x20] sm:$0xf]
    %v171 = vld [vmem:[#allocation6 + $0x24] sm:$0xf]
    %v172 = vld [vmem:[#allocation6 + $0x28] sm:$0xf]
    %v173 = vld [vmem:[#allocation6 + $0x2c] sm:$0xf]
    %v174 = vld [vmem:[#allocation6 + $0x30] sm:$0xf]
    %v175 = vld [vmem:[#allocation6 + $0x34] sm:$0xf]
    %v176 = vld [vmem:[#allocation6 + $0x38] sm:$0xf]
    %v177 = vld [vmem:[#allocation6 + $0x3c] sm:$0xf]
    %v194 = vunpack.c.l.b16 %v162
    %v195 = vunpack.c.l.b16 %v163
    %v196 = vunpack.c.l.b16 %v164
    %v197 = vunpack.c.l.b16 %v165
    %v198 = vunpack.c.l.b16 %v166
    %v199 = vunpack.c.l.b16 %v167
    %v200 = vunpack.c.l.b16 %v168
    %v201 = vunpack.c.l.b16 %v169
    %v202 = vunpack.c.l.b16 %v170
    %v203 = vunpack.c.l.b16 %v171
    %v204 = vunpack.c.l.b16 %v172
    %v205 = vunpack.c.l.b16 %v173
    %v206 = vunpack.c.l.b16 %v174
    %v207 = vunpack.c.l.b16 %v175
    %v208 = vunpack.c.l.b16 %v176
    %v209 = vunpack.c.l.b16 %v177
    %v210 = vpack.c.b16 %v195, %v194
    %v211 = vpack.c.b16 %v197, %v196
    %v212 = vpack.c.b16 %v199, %v198
    %v213 = vpack.c.b16 %v201, %v200
    %v214 = vpack.c.b16 %v203, %v202
    %v215 = vpack.c.b16 %v205, %v204
    %v216 = vpack.c.b16 %v207, %v206
    %v217 = vpack.c.b16 %v209, %v208
    %226 = vmatprep.subr.bf16.mxu0 0
    %227 = vmatpush1.bf16.msra.mxu0 %v217
    %228 = vmatprep.subr.bf16.mxu0 0
    %229 = vmatpush1.bf16.msra.mxu0 %v216
    %230 = vmatprep.subr.bf16.mxu0 0
    %231 = vmatpush1.bf16.msra.mxu0 %v215
    %232 = vmatprep.subr.bf16.mxu0 0
    %233 = vmatpush1.bf16.msra.mxu0 %v214
    %234 = vmatprep.subr.bf16.mxu0 0
    %235 = vmatpush1.bf16.msra.mxu0 %v213
    %236 = vmatprep.subr.bf16.mxu0 0
    %237 = vmatpush1.bf16.msra.mxu0 %v212
    %238 = vmatprep.subr.bf16.mxu0 0
    %239 = vmatpush1.bf16.msra.mxu0 %v211
    %240 = vmatprep.subr.bf16.mxu0 0
    %241 = vmatpush1.bf16.msra.mxu0 %v210
    %242 = vmatprep.subr.bf16.mxu0 0
    %243 = vmatpush2.bf16.msra.mxu0 0
    %244 = vmatprep.subr.bf16.mxu0 0
    %245 = vmatpush2.bf16.msra.mxu0 0
    %246 = vmatprep.subr.bf16.mxu0 0
    %247 = vmatpush2.bf16.msra.mxu0 0
    %248 = vmatprep.subr.bf16.mxu0 0
    %249 = vmatpush2.bf16.msra.mxu0 0
    %250 = vmatprep.subr.bf16.mxu0 0
    %251 = vmatpush2.bf16.msra.mxu0 0
    %252 = vmatprep.subr.bf16.mxu0 0
    %253 = vmatpush2.bf16.msra.mxu0 0
    %254 = vmatprep.subr.bf16.mxu0 0
    %255 = vmatpush2.bf16.msra.mxu0 0
    %256 = vmatprep.subr.bf16.mxu0 0
    %257 = vmatpush2.bf16.msra.mxu0 0
    %258 = vmatprep.mubr.bf16.mxu0 0
    %259 = vmatmul.mubr.bf16.gmra.mxu0 %v161
    %v260 = vpop.f32.mrf.mxu0
    %v261 = vadd.f32 0.0, %v260
    %v262 = vpop.f32.mrf.mxu0
    %v263 = vpop.f32.mrf.mxu0
    %v264 = vpop.f32.mrf.mxu0
    %265 = vdwg.mxu0
    %v266 = vadd.f32 %v160, %v261
    %v267 = vmax.f32 %v266, 0.0
    %v268 = vsub.f32 %v267, %v157
    %v269 = vmul.f32 %v268, 0.0001
    %v270 = vadd.f32 %v157, %v269
    %s271 = scalar_lea.vmem [#allocation8], 8
    %272 = vst [vmem:[%s271] sm:$0xff] %v270
    %s273 = scalar_lea.vmem [#allocation3], 16
    %v274 = vld [vmem:[%s273] sm:$0xff]
    %v275 = vpack.c.bf16 %v270, %v270
    %v276 = vld [vmem:[#allocation6] sm:$0xf]
    %v277 = vld [vmem:[#allocation6 + $0x4] sm:$0xf]
    %v278 = vld [vmem:[#allocation6 + $0x8] sm:$0xf]
    %v279 = vld [vmem:[#allocation6 + $0xc] sm:$0xf]
    %v280 = vld [vmem:[#allocation6 + $0x10] sm:$0xf]
    %v281 = vld [vmem:[#allocation6 + $0x14] sm:$0xf]
    %v282 = vld [vmem:[#allocation6 + $0x18] sm:$0xf]
    %v283 = vld [vmem:[#allocation6 + $0x1c] sm:$0xf]
    %v284 = vld [vmem:[#allocation6 + $0x20] sm:$0xf]
    %v285 = vld [vmem:[#allocation6 + $0x24] sm:$0xf]
    %v286 = vld [vmem:[#allocation6 + $0x28] sm:$0xf]
    %v287 = vld [vmem:[#allocation6 + $0x2c] sm:$0xf]
    %v288 = vld [vmem:[#allocation6 + $0x30] sm:$0xf]
    %v289 = vld [vmem:[#allocation6 + $0x34] sm:$0xf]
    %v290 = vld [vmem:[#allocation6 + $0x38] sm:$0xf]
    %v291 = vld [vmem:[#allocation6 + $0x3c] sm:$0xf]
    %v308 = vunpack.c.l.b16 %v276
    %v309 = vunpack.c.l.b16 %v277
    %v310 = vunpack.c.l.b16 %v278
    %v311 = vunpack.c.l.b16 %v279
    %v312 = vunpack.c.l.b16 %v280
    %v313 = vunpack.c.l.b16 %v281
    %v314 = vunpack.c.l.b16 %v282
    %v315 = vunpack.c.l.b16 %v283
    %v316 = vunpack.c.l.b16 %v284
    %v317 = vunpack.c.l.b16 %v285
    %v318 = vunpack.c.l.b16 %v286
    %v319 = vunpack.c.l.b16 %v287
    %v320 = vunpack.c.l.b16 %v288
    %v321 = vunpack.c.l.b16 %v289
    %v322 = vunpack.c.l.b16 %v290
    %v323 = vunpack.c.l.b16 %v291
    %v324 = vpack.c.b16 %v309, %v308
    %v325 = vpack.c.b16 %v311, %v310
    %v326 = vpack.c.b16 %v313, %v312
    %v327 = vpack.c.b16 %v315, %v314
    %v328 = vpack.c.b16 %v317, %v316
    %v329 = vpack.c.b16 %v319, %v318
    %v330 = vpack.c.b16 %v321, %v320
    %v331 = vpack.c.b16 %v323, %v322
    %340 = vmatprep.subr.bf16.mxu0 0
    %341 = vmatpush1.bf16.msra.mxu0 %v331
    %342 = vmatprep.subr.bf16.mxu0 0
    %343 = vmatpush1.bf16.msra.mxu0 %v330
    %344 = vmatprep.subr.bf16.mxu0 0
    %345 = vmatpush1.bf16.msra.mxu0 %v329
    %346 = vmatprep.subr.bf16.mxu0 0
    %347 = vmatpush1.bf16.msra.mxu0 %v328
    %348 = vmatprep.subr.bf16.mxu0 0
    %349 = vmatpush1.bf16.msra.mxu0 %v327
    %350 = vmatprep.subr.bf16.mxu0 0
    %351 = vmatpush1.bf16.msra.mxu0 %v326
    %352 = vmatprep.subr.bf16.mxu0 0
    %353 = vmatpush1.bf16.msra.mxu0 %v325
    %354 = vmatprep.subr.bf16.mxu0 0
    %355 = vmatpush1.bf16.msra.mxu0 %v324
    %356 = vmatprep.subr.bf16.mxu0 0
    %357 = vmatpush2.bf16.msra.mxu0 0
    %358 = vmatprep.subr.bf16.mxu0 0
    %359 = vmatpush2.bf16.msra.mxu0 0
    %360 = vmatprep.subr.bf16.mxu0 0
    %361 = vmatpush2.bf16.msra.mxu0 0
    %362 = vmatprep.subr.bf16.mxu0 0
    %363 = vmatpush2.bf16.msra.mxu0 0
    %364 = vmatprep.subr.bf16.mxu0 0
    %365 = vmatpush2.bf16.msra.mxu0 0
    %366 = vmatprep.subr.bf16.mxu0 0
    %367 = vmatpush2.bf16.msra.mxu0 0
    %368 = vmatprep.subr.bf16.mxu0 0
    %369 = vmatpush2.bf16.msra.mxu0 0
    %370 = vmatprep.subr.bf16.mxu0 0
    %371 = vmatpush2.bf16.msra.mxu0 0
    %372 = vmatprep.mubr.bf16.mxu0 0
    %373 = vmatmul.mubr.bf16.gmra.mxu0 %v275
    %v374 = vpop.f32.mrf.mxu0
    %v375 = vadd.f32 0.0, %v374
    %v376 = vpop.f32.mrf.mxu0
    %v377 = vpop.f32.mrf.mxu0
    %v378 = vpop.f32.mrf.mxu0
    %379 = vdwg.mxu0
    %v380 = vadd.f32 %v274, %v375
    %v381 = vmax.f32 %v380, 0.0
    %v382 = vsub.f32 %v381, %v270
    %v383 = vmul.f32 %v382, 0.0001
    %v384 = vadd.f32 %v270, %v383
    %s385 = scalar_lea.vmem [#allocation8], 16
    %386 = vst [vmem:[%s385] sm:$0xff] %v384
    %s387 = scalar_lea.vmem [#allocation3], 24
    %v388 = vld [vmem:[%s387] sm:$0xff]
    %v389 = vpack.c.bf16 %v384, %v384
    %v390 = vld [vmem:[#allocation6] sm:$0xf]
    %v391 = vld [vmem:[#allocation6 + $0x4] sm:$0xf]
    %v392 = vld [vmem:[#allocation6 + $0x8] sm:$0xf]
    %v393 = vld [vmem:[#allocation6 + $0xc] sm:$0xf]
    %v394 = vld [vmem:[#allocation6 + $0x10] sm:$0xf]
    %v395 = vld [vmem:[#allocation6 + $0x14] sm:$0xf]
    %v396 = vld [vmem:[#allocation6 + $0x18] sm:$0xf]
    %v397 = vld [vmem:[#allocation6 + $0x1c] sm:$0xf]
    %v398 = vld [vmem:[#allocation6 + $0x20] sm:$0xf]
    %v399 = vld [vmem:[#allocation6 + $0x24] sm:$0xf]
    %v400 = vld [vmem:[#allocation6 + $0x28] sm:$0xf]
    %v401 = vld [vmem:[#allocation6 + $0x2c] sm:$0xf]
    %v402 = vld [vmem:[#allocation6 + $0x30] sm:$0xf]
    %v403 = vld [vmem:[#allocation6 + $0x34] sm:$0xf]
    %v404 = vld [vmem:[#allocation6 + $0x38] sm:$0xf]
    %v405 = vld [vmem:[#allocation6 + $0x3c] sm:$0xf]
    %v422 = vunpack.c.l.b16 %v390
    %v423 = vunpack.c.l.b16 %v391
    %v424 = vunpack.c.l.b16 %v392
    %v425 = vunpack.c.l.b16 %v393
    %v426 = vunpack.c.l.b16 %v394
    %v427 = vunpack.c.l.b16 %v395
    %v428 = vunpack.c.l.b16 %v396
    %v429 = vunpack.c.l.b16 %v397
    %v430 = vunpack.c.l.b16 %v398
    %v431 = vunpack.c.l.b16 %v399
    %v432 = vunpack.c.l.b16 %v400
    %v433 = vunpack.c.l.b16 %v401
    %v434 = vunpack.c.l.b16 %v402
    %v435 = vunpack.c.l.b16 %v403
    %v436 = vunpack.c.l.b16 %v404
    %v437 = vunpack.c.l.b16 %v405
    %v438 = vpack.c.b16 %v423, %v422
    %v439 = vpack.c.b16 %v425, %v424
    %v440 = vpack.c.b16 %v427, %v426
    %v441 = vpack.c.b16 %v429, %v428
    %v442 = vpack.c.b16 %v431, %v430
    %v443 = vpack.c.b16 %v433, %v432
    %v444 = vpack.c.b16 %v435, %v434
    %v445 = vpack.c.b16 %v437, %v436
    %454 = vmatprep.subr.bf16.mxu0 0
    %455 = vmatpush1.bf16.msra.mxu0 %v445
    %456 = vmatprep.subr.bf16.mxu0 0
    %457 = vmatpush1.bf16.msra.mxu0 %v444
    %458 = vmatprep.subr.bf16.mxu0 0
    %459 = vmatpush1.bf16.msra.mxu0 %v443
    %460 = vmatprep.subr.bf16.mxu0 0
    %461 = vmatpush1.bf16.msra.mxu0 %v442
    %462 = vmatprep.subr.bf16.mxu0 0
    %463 = vmatpush1.bf16.msra.mxu0 %v441
    %464 = vmatprep.subr.bf16.mxu0 0
    %465 = vmatpush1.bf16.msra.mxu0 %v440
    %466 = vmatprep.subr.bf16.mxu0 0
    %467 = vmatpush1.bf16.msra.mxu0 %v439
    %468 = vmatprep.subr.bf16.mxu0 0
    %469 = vmatpush1.bf16.msra.mxu0 %v438
    %470 = vmatprep.subr.bf16.mxu0 0
    %471 = vmatpush2.bf16.msra.mxu0 0
    %472 = vmatprep.subr.bf16.mxu0 0
    %473 = vmatpush2.bf16.msra.mxu0 0
    %474 = vmatprep.subr.bf16.mxu0 0
    %475 = vmatpush2.bf16.msra.mxu0 0
    %476 = vmatprep.subr.bf16.mxu0 0
    %477 = vmatpush2.bf16.msra.mxu0 0
    %478 = vmatprep.subr.bf16.mxu0 0
    %479 = vmatpush2.bf16.msra.mxu0 0
    %480 = vmatprep.subr.bf16.mxu0 0
    %481 = vmatpush2.bf16.msra.mxu0 0
    %482 = vmatprep.subr.bf16.mxu0 0
    %483 = vmatpush2.bf16.msra.mxu0 0
    %484 = vmatprep.subr.bf16.mxu0 0
    %485 = vmatpush2.bf16.msra.mxu0 0
    %486 = vmatprep.mubr.bf16.mxu0 0
    %487 = vmatmul.mubr.bf16.gmra.mxu0 %v389
    %v488 = vpop.f32.mrf.mxu0
    %v489 = vadd.f32 0.0, %v488
    %v490 = vpop.f32.mrf.mxu0
    %v491 = vpop.f32.mrf.mxu0
    %v492 = vpop.f32.mrf.mxu0
    %493 = vdwg.mxu0
    %v494 = vadd.f32 %v388, %v489
    %v495 = vmax.f32 %v494, 0.0
    %v496 = vsub.f32 %v495, %v384
    %v497 = vmul.f32 %v496, 0.0001
    %v498 = vadd.f32 %v384, %v497
    %s499 = scalar_lea.vmem [#allocation8], 24
    %500 = vst [vmem:[%s499] sm:$0xff] %v498
    %s501 = scalar_lea.vmem [#allocation3], 32
    %v502 = vld [vmem:[%s501] sm:$0xff]
    %v503 = vpack.c.bf16 %v498, %v498
    %v504 = vld [vmem:[#allocation6] sm:$0xf]
    %v505 = vld [vmem:[#allocation6 + $0x4] sm:$0xf]
    %v506 = vld [vmem:[#allocation6 + $0x8] sm:$0xf]
    %v507 = vld [vmem:[#allocation6 + $0xc] sm:$0xf]
    %v508 = vld [vmem:[#allocation6 + $0x10] sm:$0xf]
    %v509 = vld [vmem:[#allocation6 + $0x14] sm:$0xf]
    %v510 = vld [vmem:[#allocation6 + $0x18] sm:$0xf]
    %v511 = vld [vmem:[#allocation6 + $0x1c] sm:$0xf]
    %v512 = vld [vmem:[#allocation6 + $0x20] sm:$0xf]
    %v513 = vld [vmem:[#allocation6 + $0x24] sm:$0xf]
    %v514 = vld [vmem:[#allocation6 + $0x28] sm:$0xf]
    %v515 = vld [vmem:[#allocation6 + $0x2c] sm:$0xf]
    %v516 = vld [vmem:[#allocation6 + $0x30] sm:$0xf]
    %v517 = vld [vmem:[#allocation6 + $0x34] sm:$0xf]
    %v518 = vld [vmem:[#allocation6 + $0x38] sm:$0xf]
    %v519 = vld [vmem:[#allocation6 + $0x3c] sm:$0xf]
    %v536 = vunpack.c.l.b16 %v504
    %v537 = vunpack.c.l.b16 %v505
    %v538 = vunpack.c.l.b16 %v506
    %v539 = vunpack.c.l.b16 %v507
    %v540 = vunpack.c.l.b16 %v508
    %v541 = vunpack.c.l.b16 %v509
    %v542 = vunpack.c.l.b16 %v510
    %v543 = vunpack.c.l.b16 %v511
    %v544 = vunpack.c.l.b16 %v512
    %v545 = vunpack.c.l.b16 %v513
    %v546 = vunpack.c.l.b16 %v514
    %v547 = vunpack.c.l.b16 %v515
    %v548 = vunpack.c.l.b16 %v516
    %v549 = vunpack.c.l.b16 %v517
    %v550 = vunpack.c.l.b16 %v518
    %v551 = vunpack.c.l.b16 %v519
    %v552 = vpack.c.b16 %v537, %v536
    %v553 = vpack.c.b16 %v539, %v538
    %v554 = vpack.c.b16 %v541, %v540
    %v555 = vpack.c.b16 %v543, %v542
    %v556 = vpack.c.b16 %v545, %v544
    %v557 = vpack.c.b16 %v547, %v546
    %v558 = vpack.c.b16 %v549, %v548
    %v559 = vpack.c.b16 %v551, %v550
    %568 = vmatprep.subr.bf16.mxu0 0
    %569 = vmatpush1.bf16.msra.mxu0 %v559
    %570 = vmatprep.subr.bf16.mxu0 0
    %571 = vmatpush1.bf16.msra.mxu0 %v558
    %572 = vmatprep.subr.bf16.mxu0 0
    %573 = vmatpush1.bf16.msra.mxu0 %v557
    %574 = vmatprep.subr.bf16.mxu0 0
    %575 = vmatpush1.bf16.msra.mxu0 %v556
    %576 = vmatprep.subr.bf16.mxu0 0
    %577 = vmatpush1.bf16.msra.mxu0 %v555
    %578 = vmatprep.subr.bf16.mxu0 0
    %579 = vmatpush1.bf16.msra.mxu0 %v554
    %580 = vmatprep.subr.bf16.mxu0 0
    %581 = vmatpush1.bf16.msra.mxu0 %v553
    %582 = vmatprep.subr.bf16.mxu0 0
    %583 = vmatpush1.bf16.msra.mxu0 %v552
    %584 = vmatprep.subr.bf16.mxu0 0
    %585 = vmatpush2.bf16.msra.mxu0 0
    %586 = vmatprep.subr.bf16.mxu0 0
    %587 = vmatpush2.bf16.msra.mxu0 0
    %588 = vmatprep.subr.bf16.mxu0 0
    %589 = vmatpush2.bf16.msra.mxu0 0
    %590 = vmatprep.subr.bf16.mxu0 0
    %591 = vmatpush2.bf16.msra.mxu0 0
    %592 = vmatprep.subr.bf16.mxu0 0
    %593 = vmatpush2.bf16.msra.mxu0 0
    %594 = vmatprep.subr.bf16.mxu0 0
    %595 = vmatpush2.bf16.msra.mxu0 0
    %596 = vmatprep.subr.bf16.mxu0 0
    %597 = vmatpush2.bf16.msra.mxu0 0
    %598 = vmatprep.subr.bf16.mxu0 0
    %599 = vmatpush2.bf16.msra.mxu0 0
    %600 = vmatprep.mubr.bf16.mxu0 0
    %601 = vmatmul.mubr.bf16.gmra.mxu0 %v503
    %v602 = vpop.f32.mrf.mxu0
    %v603 = vadd.f32 0.0, %v602
    %v604 = vpop.f32.mrf.mxu0
    %v605 = vpop.f32.mrf.mxu0
    %v606 = vpop.f32.mrf.mxu0
    %607 = vdwg.mxu0
    %v608 = vadd.f32 %v502, %v603
    %v609 = vmax.f32 %v608, 0.0
    %v610 = vsub.f32 %v609, %v498
    %v611 = vmul.f32 %v610, 0.0001
    %v612 = vadd.f32 %v498, %v611
    %s613 = scalar_lea.vmem [#allocation8], 32
    %614 = vst [vmem:[%s613] sm:$0xff] %v612
    %s615 = scalar_lea.vmem [#allocation3], 40
    %v616 = vld [vmem:[%s615] sm:$0xff]
    %v617 = vpack.c.bf16 %v612, %v612
    %v618 = vld [vmem:[#allocation6] sm:$0xf]
    %v619 = vld [vmem:[#allocation6 + $0x4] sm:$0xf]
    %v620 = vld [vmem:[#allocation6 + $0x8] sm:$0xf]
    %v621 = vld [vmem:[#allocation6 + $0xc] sm:$0xf]
    %v622 = vld [vmem:[#allocation6 + $0x10] sm:$0xf]
    %v623 = vld [vmem:[#allocation6 + $0x14] sm:$0xf]
    %v624 = vld [vmem:[#allocation6 + $0x18] sm:$0xf]
    %v625 = vld [vmem:[#allocation6 + $0x1c] sm:$0xf]
    %v626 = vld [vmem:[#allocation6 + $0x20] sm:$0xf]
    %v627 = vld [vmem:[#allocation6 + $0x24] sm:$0xf]
    %v628 = vld [vmem:[#allocation6 + $0x28] sm:$0xf]
    %v629 = vld [vmem:[#allocation6 + $0x2c] sm:$0xf]
    %v630 = vld [vmem:[#allocation6 + $0x30] sm:$0xf]
    %v631 = vld [vmem:[#allocation6 + $0x34] sm:$0xf]
    %v632 = vld [vmem:[#allocation6 + $0x38] sm:$0xf]
    %v633 = vld [vmem:[#allocation6 + $0x3c] sm:$0xf]
    %v650 = vunpack.c.l.b16 %v618
    %v651 = vunpack.c.l.b16 %v619
    %v652 = vunpack.c.l.b16 %v620
    %v653 = vunpack.c.l.b16 %v621
    %v654 = vunpack.c.l.b16 %v622
    %v655 = vunpack.c.l.b16 %v623
    %v656 = vunpack.c.l.b16 %v624
    %v657 = vunpack.c.l.b16 %v625
    %v658 = vunpack.c.l.b16 %v626
    %v659 = vunpack.c.l.b16 %v627
    %v660 = vunpack.c.l.b16 %v628
    %v661 = vunpack.c.l.b16 %v629
    %v662 = vunpack.c.l.b16 %v630
    %v663 = vunpack.c.l.b16 %v631
    %v664 = vunpack.c.l.b16 %v632
    %v665 = vunpack.c.l.b16 %v633
    %v666 = vpack.c.b16 %v651, %v650
    %v667 = vpack.c.b16 %v653, %v652
    %v668 = vpack.c.b16 %v655, %v654
    %v669 = vpack.c.b16 %v657, %v656
    %v670 = vpack.c.b16 %v659, %v658
    %v671 = vpack.c.b16 %v661, %v660
    %v672 = vpack.c.b16 %v663, %v662
    %v673 = vpack.c.b16 %v665, %v664
    %682 = vmatprep.subr.bf16.mxu0 0
    %683 = vmatpush1.bf16.msra.mxu0 %v673
    %684 = vmatprep.subr.bf16.mxu0 0
    %685 = vmatpush1.bf16.msra.mxu0 %v672
    %686 = vmatprep.subr.bf16.mxu0 0
    %687 = vmatpush1.bf16.msra.mxu0 %v671
    %688 = vmatprep.subr.bf16.mxu0 0
    %689 = vmatpush1.bf16.msra.mxu0 %v670
    %690 = vmatprep.subr.bf16.mxu0 0
    %691 = vmatpush1.bf16.msra.mxu0 %v669
    %692 = vmatprep.subr.bf16.mxu0 0
    %693 = vmatpush1.bf16.msra.mxu0 %v668
    %694 = vmatprep.subr.bf16.mxu0 0
    %695 = vmatpush1.bf16.msra.mxu0 %v667
    %696 = vmatprep.subr.bf16.mxu0 0
    %697 = vmatpush1.bf16.msra.mxu0 %v666
    %698 = vmatprep.subr.bf16.mxu0 0
    %699 = vmatpush2.bf16.msra.mxu0 0
    %700 = vmatprep.subr.bf16.mxu0 0
    %701 = vmatpush2.bf16.msra.mxu0 0
    %702 = vmatprep.subr.bf16.mxu0 0
    %703 = vmatpush2.bf16.msra.mxu0 0
    %704 = vmatprep.subr.bf16.mxu0 0
    %705 = vmatpush2.bf16.msra.mxu0 0
    %706 = vmatprep.subr.bf16.mxu0 0
    %707 = vmatpush2.bf16.msra.mxu0 0
    %708 = vmatprep.subr.bf16.mxu0 0
    %709 = vmatpush2.bf16.msra.mxu0 0
    %710 = vmatprep.subr.bf16.mxu0 0
    %711 = vmatpush2.bf16.msra.mxu0 0
    %712 = vmatprep.subr.bf16.mxu0 0
    %713 = vmatpush2.bf16.msra.mxu0 0
    %714 = vmatprep.mubr.bf16.mxu0 0
    %715 = vmatmul.mubr.bf16.gmra.mxu0 %v617
    %v716 = vpop.f32.mrf.mxu0
    %v717 = vadd.f32 0.0, %v716
    %v718 = vpop.f32.mrf.mxu0
    %v719 = vpop.f32.mrf.mxu0
    %v720 = vpop.f32.mrf.mxu0
    %721 = vdwg.mxu0
    %v722 = vadd.f32 %v616, %v717
    %v723 = vmax.f32 %v722, 0.0
    %v724 = vsub.f32 %v723, %v612
    %v725 = vmul.f32 %v724, 0.0001
    %v726 = vadd.f32 %v612, %v725
    %s727 = scalar_lea.vmem [#allocation8], 40
    %728 = vst [vmem:[%s727] sm:$0xff] %v726
    %s729 = scalar_lea.vmem [#allocation3], 48
    %v730 = vld [vmem:[%s729] sm:$0xff]
    %v731 = vpack.c.bf16 %v726, %v726
    %v732 = vld [vmem:[#allocation6] sm:$0xf]
    %v733 = vld [vmem:[#allocation6 + $0x4] sm:$0xf]
    %v734 = vld [vmem:[#allocation6 + $0x8] sm:$0xf]
    %v735 = vld [vmem:[#allocation6 + $0xc] sm:$0xf]
    %v736 = vld [vmem:[#allocation6 + $0x10] sm:$0xf]
    %v737 = vld [vmem:[#allocation6 + $0x14] sm:$0xf]
    %v738 = vld [vmem:[#allocation6 + $0x18] sm:$0xf]
    %v739 = vld [vmem:[#allocation6 + $0x1c] sm:$0xf]
    %v740 = vld [vmem:[#allocation6 + $0x20] sm:$0xf]
    %v741 = vld [vmem:[#allocation6 + $0x24] sm:$0xf]
    %v742 = vld [vmem:[#allocation6 + $0x28] sm:$0xf]
    %v743 = vld [vmem:[#allocation6 + $0x2c] sm:$0xf]
    %v744 = vld [vmem:[#allocation6 + $0x30] sm:$0xf]
    %v745 = vld [vmem:[#allocation6 + $0x34] sm:$0xf]
    %v746 = vld [vmem:[#allocation6 + $0x38] sm:$0xf]
    %v747 = vld [vmem:[#allocation6 + $0x3c] sm:$0xf]
    %v764 = vunpack.c.l.b16 %v732
    %v765 = vunpack.c.l.b16 %v733
    %v766 = vunpack.c.l.b16 %v734
    %v767 = vunpack.c.l.b16 %v735
    %v768 = vunpack.c.l.b16 %v736
    %v769 = vunpack.c.l.b16 %v737
    %v770 = vunpack.c.l.b16 %v738
    %v771 = vunpack.c.l.b16 %v739
    %v772 = vunpack.c.l.b16 %v740
    %v773 = vunpack.c.l.b16 %v741
    %v774 = vunpack.c.l.b16 %v742
    %v775 = vunpack.c.l.b16 %v743
    %v776 = vunpack.c.l.b16 %v744
    %v777 = vunpack.c.l.b16 %v745
    %v778 = vunpack.c.l.b16 %v746
    %v779 = vunpack.c.l.b16 %v747
    %v780 = vpack.c.b16 %v765, %v764
    %v781 = vpack.c.b16 %v767, %v766
    %v782 = vpack.c.b16 %v769, %v768
    %v783 = vpack.c.b16 %v771, %v770
    %v784 = vpack.c.b16 %v773, %v772
    %v785 = vpack.c.b16 %v775, %v774
    %v786 = vpack.c.b16 %v777, %v776
    %v787 = vpack.c.b16 %v779, %v778
    %796 = vmatprep.subr.bf16.mxu0 0
    %797 = vmatpush1.bf16.msra.mxu0 %v787
    %798 = vmatprep.subr.bf16.mxu0 0
    %799 = vmatpush1.bf16.msra.mxu0 %v786
    %800 = vmatprep.subr.bf16.mxu0 0
    %801 = vmatpush1.bf16.msra.mxu0 %v785
    %802 = vmatprep.subr.bf16.mxu0 0
    %803 = vmatpush1.bf16.msra.mxu0 %v784
    %804 = vmatprep.subr.bf16.mxu0 0
    %805 = vmatpush1.bf16.msra.mxu0 %v783
    %806 = vmatprep.subr.bf16.mxu0 0
    %807 = vmatpush1.bf16.msra.mxu0 %v782
    %808 = vmatprep.subr.bf16.mxu0 0
    %809 = vmatpush1.bf16.msra.mxu0 %v781
    %810 = vmatprep.subr.bf16.mxu0 0
    %811 = vmatpush1.bf16.msra.mxu0 %v780
    %812 = vmatprep.subr.bf16.mxu0 0
    %813 = vmatpush2.bf16.msra.mxu0 0
    %814 = vmatprep.subr.bf16.mxu0 0
    %815 = vmatpush2.bf16.msra.mxu0 0
    %816 = vmatprep.subr.bf16.mxu0 0
    %817 = vmatpush2.bf16.msra.mxu0 0
    %818 = vmatprep.subr.bf16.mxu0 0
    %819 = vmatpush2.bf16.msra.mxu0 0
    %820 = vmatprep.subr.bf16.mxu0 0
    %821 = vmatpush2.bf16.msra.mxu0 0
    %822 = vmatprep.subr.bf16.mxu0 0
    %823 = vmatpush2.bf16.msra.mxu0 0
    %824 = vmatprep.subr.bf16.mxu0 0
    %825 = vmatpush2.bf16.msra.mxu0 0
    %826 = vmatprep.subr.bf16.mxu0 0
    %827 = vmatpush2.bf16.msra.mxu0 0
    %828 = vmatprep.mubr.bf16.mxu0 0
    %829 = vmatmul.mubr.bf16.gmra.mxu0 %v731
    %v830 = vpop.f32.mrf.mxu0
    %v831 = vadd.f32 0.0, %v830
    %v832 = vpop.f32.mrf.mxu0
    %v833 = vpop.f32.mrf.mxu0
    %v834 = vpop.f32.mrf.mxu0
    %835 = vdwg.mxu0
    %v836 = vadd.f32 %v730, %v831
    %v837 = vmax.f32 %v836, 0.0
    %v838 = vsub.f32 %v837, %v726
    %v839 = vmul.f32 %v838, 0.0001
    %v840 = vadd.f32 %v726, %v839
    %s841 = scalar_lea.vmem [#allocation8], 48
    %842 = vst [vmem:[%s841] sm:$0xff] %v840
    %s843 = scalar_lea.vmem [#allocation3], 56
    %v844 = vld [vmem:[%s843] sm:$0xff]
    %v845 = vpack.c.bf16 %v840, %v840
    %v846 = vld [vmem:[#allocation6] sm:$0xf]
    %v847 = vld [vmem:[#allocation6 + $0x4] sm:$0xf]
    %v848 = vld [vmem:[#allocation6 + $0x8] sm:$0xf]
    %v849 = vld [vmem:[#allocation6 + $0xc] sm:$0xf]
    %v850 = vld [vmem:[#allocation6 + $0x10] sm:$0xf]
    %v851 = vld [vmem:[#allocation6 + $0x14] sm:$0xf]
    %v852 = vld [vmem:[#allocation6 + $0x18] sm:$0xf]
    %v853 = vld [vmem:[#allocation6 + $0x1c] sm:$0xf]
    %v854 = vld [vmem:[#allocation6 + $0x20] sm:$0xf]
    %v855 = vld [vmem:[#allocation6 + $0x24] sm:$0xf]
    %v856 = vld [vmem:[#allocation6 + $0x28] sm:$0xf]
    %v857 = vld [vmem:[#allocation6 + $0x2c] sm:$0xf]
    %v858 = vld [vmem:[#allocation6 + $0x30] sm:$0xf]
    %v859 = vld [vmem:[#allocation6 + $0x34] sm:$0xf]
    %v860 = vld [vmem:[#allocation6 + $0x38] sm:$0xf]
    %v861 = vld [vmem:[#allocation6 + $0x3c] sm:$0xf]
    %v878 = vunpack.c.l.b16 %v846
    %v879 = vunpack.c.l.b16 %v847
    %v880 = vunpack.c.l.b16 %v848
    %v881 = vunpack.c.l.b16 %v849
    %v882 = vunpack.c.l.b16 %v850
    %v883 = vunpack.c.l.b16 %v851
    %v884 = vunpack.c.l.b16 %v852
    %v885 = vunpack.c.l.b16 %v853
    %v886 = vunpack.c.l.b16 %v854
    %v887 = vunpack.c.l.b16 %v855
    %v888 = vunpack.c.l.b16 %v856
    %v889 = vunpack.c.l.b16 %v857
    %v890 = vunpack.c.l.b16 %v858
    %v891 = vunpack.c.l.b16 %v859
    %v892 = vunpack.c.l.b16 %v860
    %v893 = vunpack.c.l.b16 %v861
    %v894 = vpack.c.b16 %v879, %v878
    %v895 = vpack.c.b16 %v881, %v880
    %v896 = vpack.c.b16 %v883, %v882
    %v897 = vpack.c.b16 %v885, %v884
    %v898 = vpack.c.b16 %v887, %v886
    %v899 = vpack.c.b16 %v889, %v888
    %v900 = vpack.c.b16 %v891, %v890
    %v901 = vpack.c.b16 %v893, %v892
    %910 = vmatprep.subr.bf16.mxu0 0
    %911 = vmatpush1.bf16.msra.mxu0 %v901
    %912 = vmatprep.subr.bf16.mxu0 0
    %913 = vmatpush1.bf16.msra.mxu0 %v900
    %914 = vmatprep.subr.bf16.mxu0 0
    %915 = vmatpush1.bf16.msra.mxu0 %v899
    %916 = vmatprep.subr.bf16.mxu0 0
    %917 = vmatpush1.bf16.msra.mxu0 %v898
    %918 = vmatprep.subr.bf16.mxu0 0
    %919 = vmatpush1.bf16.msra.mxu0 %v897
    %920 = vmatprep.subr.bf16.mxu0 0
    %921 = vmatpush1.bf16.msra.mxu0 %v896
    %922 = vmatprep.subr.bf16.mxu0 0
    %923 = vmatpush1.bf16.msra.mxu0 %v895
    %924 = vmatprep.subr.bf16.mxu0 0
    %925 = vmatpush1.bf16.msra.mxu0 %v894
    %926 = vmatprep.subr.bf16.mxu0 0
    %927 = vmatpush2.bf16.msra.mxu0 0
    %928 = vmatprep.subr.bf16.mxu0 0
    %929 = vmatpush2.bf16.msra.mxu0 0
    %930 = vmatprep.subr.bf16.mxu0 0
    %931 = vmatpush2.bf16.msra.mxu0 0
    %932 = vmatprep.subr.bf16.mxu0 0
    %933 = vmatpush2.bf16.msra.mxu0 0
    %934 = vmatprep.subr.bf16.mxu0 0
    %935 = vmatpush2.bf16.msra.mxu0 0
    %936 = vmatprep.subr.bf16.mxu0 0
    %937 = vmatpush2.bf16.msra.mxu0 0
    %938 = vmatprep.subr.bf16.mxu0 0
    %939 = vmatpush2.bf16.msra.mxu0 0
    %940 = vmatprep.subr.bf16.mxu0 0
    %941 = vmatpush2.bf16.msra.mxu0 0
    %942 = vmatprep.mubr.bf16.mxu0 0
    %943 = vmatmul.mubr.bf16.gmra.mxu0 %v845
    %v944 = vpop.f32.mrf.mxu0
    %v945 = vadd.f32 0.0, %v944
    %v946 = vpop.f32.mrf.mxu0
    %v947 = vpop.f32.mrf.mxu0
    %v948 = vpop.f32.mrf.mxu0
    %949 = vdwg.mxu0
    %v950 = vadd.f32 %v844, %v945
    %v951 = vmax.f32 %v950, 0.0
    %v952 = vsub.f32 %v951, %v840
    %v953 = vmul.f32 %v952, 0.0001
    %v954 = vadd.f32 %v840, %v953
    %s955 = scalar_lea.vmem [#allocation8], 56
    %956 = vst [vmem:[%s955] sm:$0xff] %v954
    %957 = vst [vmem:[#allocation2] sm:$0xff] %v954
    // Predicated region
    $region22: #{tpu_custom_call.1} parent=1 // pred_check
      _
    $region23: #{tpu_custom_call.1} parent=1 // pred_check_branch
      %959 = sbr.rel (0) target = $region25
    $region24: #{tpu_custom_call.1} parent=1 // pred_region
      %s961 = ssub.s32 1024, 1024
      %962 = vsyncadd [#allocation5], %s961
      %s963 = sshll.u32 [#allocation8], 4
      %s964 = int_to_ptr.vmem [resolvable:$true] %s963
      %969 = dma.vmem_to_hbm [thread:$0]  %s964, 1024, %s2, [#allocation5], 128, 128, 8
    $region25: #{tpu_custom_call.1} parent=1 // pred_fallthru
      _
    // Predicated region
    $region26: #{tpu_custom_call.1} parent=1 // pred_check
      _
    $region27: #{tpu_custom_call.1} parent=1 // pred_check_branch
      %971 = sbr.rel (0) target = $region29
    $region28: #{tpu_custom_call.1} parent=1 // pred_region
      %972 = dma.done [#allocation5], 1024
    $region29: #{tpu_custom_call.1} parent=1 // pred_fallthru
      _
    %973 = vsyncpa [#allocation4], 1
    %974 = vsyncpa [#allocation7], 1
    %975 = vsyncpa [#allocation5], 1

</llo_original>
